<compile_context>
chip_gen: v7x
topology: tpu7x:2x2x1
jax: 0.10.0
libtpu: 0.0.40
codegen_flags: <defaults>
</compile_context>

<pallas_src>
import functools

import jax
import jax.numpy as jnp
from jax.experimental import pallas as pl
from jax.experimental.pallas import tpu as pltpu

COND_DIM = 16
IN_DIM = 2
HIDDEN = 64


def _round_up(n, m):
    return ((n + m - 1) // m) * m


def _pick_b_tile(batch, requested=None, max_tile=16384, min_steps=2):
    """Batch-tile (lane) width: big enough to amortize per-step overhead,
    small enough that the grid has >= min_steps steps (v7x megacore)."""
    b128 = _round_up(batch, 128)
    if requested is None:
        t = min(max_tile, b128)
    else:
        t = min(_round_up(int(requested), 128), b128)
    if b128 >= min_steps * 128:
        t = min(t, _round_up(-(-b128 // min_steps), 128))
    return max(t, 128)


def _disc_kernel(xT_ref, bitsT_ref, w1x_ref, w1b_ref, b1_ref,
                 w2_ref, b2_ref, w3_ref, b3_ref, o_ref):
    # Feature-major activations: (features, B_tile); batch on the 128-lane axis.
    xT = xT_ref[...].astype(jnp.float32)        # (IN_DIM,   Bt)
    cT = bitsT_ref[...].astype(jnp.float32)     # (COND_DIM, Bt)  int8 in HBM

    # ---- Layer 1: Linear(in_dim + cond_dim -> 64) + LeakyReLU(0.2) ----------
    # Both halves of the split W1 on the MXU; no concat buffer anywhere.
    h = (jnp.dot(w1b_ref[...], cT, preferred_element_type=jnp.float32)
         + jnp.dot(w1x_ref[...], xT, preferred_element_type=jnp.float32)
         + b1_ref[...])                                              # (H, Bt)
    h = jnp.maximum(h, 0.2 * h)
    # Dropout(0.2): identity at inference time.
    # TODO(synk): training-mode dropout would need pltpu.prng_random_bits + mask.

    # ---- Layer 2: Linear(64 -> 64) + LeakyReLU(0.2) --------------------------
    h = jnp.dot(w2_ref[...], h, preferred_element_type=jnp.float32) + b2_ref[...]
    h = jnp.maximum(h, 0.2 * h)

    # ---- Layer 3: Linear(64 -> 1) + Sigmoid (MXU, M = 1) ---------------------
    logits = jnp.dot(w3_ref[...], h, preferred_element_type=jnp.float32) + b3_ref[...]
    o_ref[...] = jax.nn.sigmoid(logits)                              # (1, Bt)


@functools.partial(jax.jit, static_argnames=("b_tile",))
def discriminator_forward_fm(xT, bitsT, params, *, b_tile=None):
    """Feature-major forward.

    xT:    (IN_DIM, B)   float
    bitsT: (COND_DIM, B) int8 / bool / float (kept in its HBM dtype; kernel casts)
    returns (1, B) float32 — lane-dense output slab.
    """
    w1, b1, w2, b2, w3, b3 = params
    in_dim, B = xT.shape
    cond_dim = bitsT.shape[0]
    hidden = w1.shape[1]

    # One-time resident-weight layout (tiny; outside the hot loop).
    w1xT = jnp.asarray(w1[:in_dim].T, jnp.float32)       # (H, in_dim)
    w1bT = jnp.asarray(w1[in_dim:].T, jnp.float32)       # (H, cond_dim)
    w2T = jnp.asarray(w2.T, jnp.float32)                 # (H, H)
    b1c = jnp.asarray(b1, jnp.float32).reshape(hidden, 1)
    b2c = jnp.asarray(b2, jnp.float32).reshape(hidden, 1)
    w3r = jnp.asarray(w3, jnp.float32).reshape(1, hidden)   # row vector for MXU
    b3c = jnp.asarray(b3, jnp.float32).reshape(1, 1)

    bt = _pick_b_tile(B, b_tile)
    B_pad = _round_up(B, bt)
    if B_pad != B:   # only copies when B is not already tile-aligned
        xT = jnp.pad(xT, ((0, 0), (0, B_pad - B)))
        bitsT = jnp.pad(bitsT, ((0, 0), (0, B_pad - B)))

    grid = (B_pad // bt,)
    batch_spec = lambda rows: pl.BlockSpec((rows, bt), lambda i: (0, i))
    resident = lambda shape: pl.BlockSpec(shape, lambda i: (0, 0))

    # Generous scoped-VMEM headroom for very large tiles (v5e default is 16 MiB).
    vmem_bytes = int(min(56 * 1024 * 1024, max(32 * 1024 * 1024, 1024 * bt)))

    outT = pl.pallas_call(
        _disc_kernel,
        out_shape=jax.ShapeDtypeStruct((1, B_pad), jnp.float32),
        grid=grid,
        in_specs=[
            batch_spec(in_dim),              # xT     (streamed per batch tile)
            batch_spec(cond_dim),            # bitsT  (streamed, int8 in HBM)
            resident((hidden, in_dim)),      # w1xT   (VMEM-resident)
            resident((hidden, cond_dim)),    # w1bT
            resident((hidden, 1)),           # b1
            resident((hidden, hidden)),      # w2T
            resident((hidden, 1)),           # b2
            resident((1, hidden)),           # w3 (row)
            resident((1, 1)),                # b3
        ],
        out_specs=pl.BlockSpec((1, bt), lambda i: (0, i)),   # lane-dense output
        compiler_params=pltpu.CompilerParams(
            dimension_semantics=("parallel",),   # megacore split on v7x
            vmem_limit_bytes=vmem_bytes,
        ),
    )(xT, bitsT, w1xT, w1bT, b1c, w2T, b2c, w3r, b3c)

    return outT[:, :B]                                        # (1, B)


def discriminator_forward(x, bits, params, *, b_tile=None):
    """Row-major convenience wrapper matching the PyTorch API:
    x (B, IN_DIM), bits (B, COND_DIM) -> (B, 1).  Prefer the feature-major
    entry point upstream to avoid the transpose copies."""
    outT = discriminator_forward_fm(x.T, bits.T, params, b_tile=b_tile)
    return outT.T


def init_params(key, in_dim=IN_DIM, cond_dim=COND_DIM, hidden=HIDDEN):
    """Deterministic init mimicking PyTorch nn.Linear default (U[-1/sqrt(fan_in), ...])."""
    dims = [(in_dim + cond_dim, hidden), (hidden, hidden), (hidden, 1)]
    params = []
    for (fan_in, fan_out) in dims:
        key, kw, kb = jax.random.split(key, 3)
        bound = 1.0 / (fan_in ** 0.5)
        w = jax.random.uniform(kw, (fan_in, fan_out), jnp.float32, -bound, bound)
        b = jax.random.uniform(kb, (1, fan_out), jnp.float32, -bound, bound)
        params.extend([w, b])
    return tuple(params)


def _reference_forward(x, bits, params):
    """Plain-JAX reference of the same forward pass (sanity check)."""
    w1, b1, w2, b2, w3, b3 = params
    xb = jnp.concatenate([x, bits], axis=1)
    h = xb @ w1 + b1
    h = jnp.where(h > 0, h, 0.2 * h)
    h = h @ w2 + b2
    h = jnp.where(h > 0, h, 0.2 * h)
    return jax.nn.sigmoid(h @ w3 + b3)


if __name__ == "__main__":
    key = jax.random.PRNGKey(0)
    key, kx, kb = jax.random.split(key, 3)

    B = 256
    # Feature-major inputs (the preferred layout) + int8 condition bits.
    x_fm = jax.random.normal(kx, (IN_DIM, B), jnp.float32)                 # (2, B)
    bits_fm = (jax.random.uniform(kb, (COND_DIM, B)) > 0.5).astype(jnp.int8)  # (16, B)

    params = init_params(jax.random.PRNGKey(42))

    # Feature-major path: B=256 -> b_tile=128 -> 2 grid steps (pipeline + megacore).
    out = discriminator_forward_fm(x_fm, bits_fm, params)
    out = jax.block_until_ready(out)

    ref = _reference_forward(x_fm.T, bits_fm.T.astype(jnp.float32), params)
    assert out.shape == (1, B)
    assert jnp.allclose(out.T, ref, atol=1e-5, rtol=1e-5), "fm path mismatch vs JAX reference"

    # Row-major convenience path (matches the PyTorch (B, feat) calling convention).
    out_rm = jax.block_until_ready(discriminator_forward(x_fm.T, bits_fm.T, params))
    assert out_rm.shape == (B, 1)
    assert jnp.allclose(out_rm, ref, atol=1e-5, rtol=1e-5), "row-major path mismatch"

    print("KERNEL_OK")
</pallas_src>

<mosaic_0001>
module attributes {stable_mosaic.version = 11 : i64} {
  func.func @_disc_kernel(%arg0: i32, %arg1: memref<2x128xf32, #tpu.memory_space<vmem>>, %arg2: memref<16x128xi8, #tpu.memory_space<vmem>>, %arg3: memref<64x2xf32, #tpu.memory_space<vmem>>, %arg4: memref<64x16xf32, #tpu.memory_space<vmem>>, %arg5: memref<64x1xf32, #tpu.memory_space<vmem>>, %arg6: memref<64x64xf32, #tpu.memory_space<vmem>>, %arg7: memref<64x1xf32, #tpu.memory_space<vmem>>, %arg8: memref<1x64xf32, #tpu.memory_space<vmem>>, %arg9: memref<1x1xf32, #tpu.memory_space<vmem>>, %arg10: memref<1x128xf32, #tpu.memory_space<vmem>>) attributes {dimension_semantics = [#tpu.dimension_semantics<parallel>], iteration_bounds = array<i64: 2>, scalar_prefetch = 0 : i64, scratch_operands = 0 : i64, tpu.core_type = #tpu.core_type<tc>, window_params = [{transform_indices = @transform_0, window_bounds = array<i64: 2, 128>}, {transform_indices = @transform_1, window_bounds = array<i64: 16, 128>}, {pipeline_mode = #tpu.pipeline_mode<synchronous>, transform_indices = @transform_2, window_bounds = array<i64: 64, 2>}, {pipeline_mode = #tpu.pipeline_mode<synchronous>, transform_indices = @transform_3, window_bounds = array<i64: 64, 16>}, {pipeline_mode = #tpu.pipeline_mode<synchronous>, transform_indices = @transform_4, window_bounds = array<i64: 64, 1>}, {pipeline_mode = #tpu.pipeline_mode<synchronous>, transform_indices = @transform_5, window_bounds = array<i64: 64, 64>}, {pipeline_mode = #tpu.pipeline_mode<synchronous>, transform_indices = @transform_6, window_bounds = array<i64: 64, 1>}, {pipeline_mode = #tpu.pipeline_mode<synchronous>, transform_indices = @transform_7, window_bounds = array<i64: 1, 64>}, {pipeline_mode = #tpu.pipeline_mode<synchronous>, transform_indices = @transform_8, window_bounds = array<i64: 1, 1>}, {transform_indices = @transform_9, window_bounds = array<i64: 1, 128>}]} {
    %c0 = arith.constant 0 : index
    %c0_0 = arith.constant 0 : index
    %0 = vector.load %arg1[%c0, %c0_0] : memref<2x128xf32, #tpu.memory_space<vmem>>, vector<2x128xf32>
    %c0_1 = arith.constant 0 : index
    %c0_2 = arith.constant 0 : index
    %1 = vector.load %arg2[%c0_1, %c0_2] : memref<16x128xi8, #tpu.memory_space<vmem>>, vector<16x128xi8>
    %2 = arith.sitofp %1 : vector<16x128xi8> to vector<16x128xf32>
    %c0_3 = arith.constant 0 : index
    %c0_4 = arith.constant 0 : index
    %3 = vector.load %arg4[%c0_3, %c0_4] : memref<64x16xf32, #tpu.memory_space<vmem>>, vector<64x16xf32>
    %cst = arith.constant dense<0.000000e+00> : vector<64x128xf32>
    %4 = tpu.matmul %3, %2, %cst {dimension_numbers = #tpu.dot_dimension_numbers<[1], [0], [0], [1], [0, 0, 1, 1], [], []>} : vector<64x16xf32>, vector<16x128xf32>, vector<64x128xf32> -> vector<64x128xf32>
    %c0_5 = arith.constant 0 : index
    %c0_6 = arith.constant 0 : index
    %5 = vector.load %arg3[%c0_5, %c0_6] : memref<64x2xf32, #tpu.memory_space<vmem>>, vector<64x2xf32>
    %cst_7 = arith.constant dense<0.000000e+00> : vector<64x128xf32>
    %6 = tpu.matmul %5, %0, %cst_7 {dimension_numbers = #tpu.dot_dimension_numbers<[1], [0], [0], [1], [0, 0, 1, 1], [], []>} : vector<64x2xf32>, vector<2x128xf32>, vector<64x128xf32> -> vector<64x128xf32>
    %7 = arith.addf %4, %6 : vector<64x128xf32>
    %c0_8 = arith.constant 0 : index
    %c0_9 = arith.constant 0 : index
    %8 = vector.load %arg5[%c0_8, %c0_9] : memref<64x1xf32, #tpu.memory_space<vmem>>, vector<64x1xf32>
    %9 = vector.broadcast %8 : vector<64x1xf32> to vector<64x128xf32>
    %10 = arith.addf %7, %9 : vector<64x128xf32>
    %cst_10 = arith.constant 2.000000e-01 : f32
    %11 = vector.broadcast %cst_10 : f32 to vector<64x128xf32>
    %12 = arith.mulf %11, %10 : vector<64x128xf32>
    %13 = arith.maximumf %10, %12 : vector<64x128xf32>
    %c0_11 = arith.constant 0 : index
    %c0_12 = arith.constant 0 : index
    %14 = vector.load %arg6[%c0_11, %c0_12] : memref<64x64xf32, #tpu.memory_space<vmem>>, vector<64x64xf32>
    %cst_13 = arith.constant dense<0.000000e+00> : vector<64x128xf32>
    %15 = tpu.matmul %14, %13, %cst_13 {dimension_numbers = #tpu.dot_dimension_numbers<[1], [0], [0], [1], [0, 0, 1, 1], [], []>} : vector<64x64xf32>, vector<64x128xf32>, vector<64x128xf32> -> vector<64x128xf32>
    %c0_14 = arith.constant 0 : index
    %c0_15 = arith.constant 0 : index
    %16 = vector.load %arg7[%c0_14, %c0_15] : memref<64x1xf32, #tpu.memory_space<vmem>>, vector<64x1xf32>
    %17 = vector.broadcast %16 : vector<64x1xf32> to vector<64x128xf32>
    %18 = arith.addf %15, %17 : vector<64x128xf32>
    %cst_16 = arith.constant 2.000000e-01 : f32
    %19 = vector.broadcast %cst_16 : f32 to vector<64x128xf32>
    %20 = arith.mulf %19, %18 : vector<64x128xf32>
    %21 = arith.maximumf %18, %20 : vector<64x128xf32>
    %c0_17 = arith.constant 0 : index
    %c0_18 = arith.constant 0 : index
    %22 = vector.load %arg8[%c0_17, %c0_18] : memref<1x64xf32, #tpu.memory_space<vmem>>, vector<1x64xf32>
    %cst_19 = arith.constant dense<0.000000e+00> : vector<1x128xf32>
    %23 = tpu.matmul %22, %21, %cst_19 {dimension_numbers = #tpu.dot_dimension_numbers<[1], [0], [0], [1], [0, 0, 1, 1], [], []>} : vector<1x64xf32>, vector<64x128xf32>, vector<1x128xf32> -> vector<1x128xf32>
    %c0_20 = arith.constant 0 : index
    %c0_21 = arith.constant 0 : index
    %24 = vector.load %arg9[%c0_20, %c0_21] : memref<1x1xf32, #tpu.memory_space<vmem>>, vector<1x1xf32>
    %25 = vector.broadcast %24 : vector<1x1xf32> to vector<1x128xf32>
    %26 = arith.addf %23, %25 : vector<1x128xf32>
    %27 = arith.negf %26 : vector<1x128xf32>
    %28 = math.exp %27 : vector<1x128xf32>
    %cst_22 = arith.constant 1.000000e+00 : f32
    %29 = vector.broadcast %cst_22 : f32 to vector<1x128xf32>
    %30 = arith.addf %29, %28 : vector<1x128xf32>
    %31 = arith.divf %29, %30 : vector<1x128xf32>
    %c0_23 = arith.constant 0 : index
    %c0_24 = arith.constant 0 : index
    %32 = vector.load %arg10[%c0_23, %c0_24] : memref<1x128xf32, #tpu.memory_space<vmem>>, vector<1x128xf32>
    tpu.vector_store %arg10[%c0_23, %c0_24], %31 {strides = array<i32>} : memref<1x128xf32, #tpu.memory_space<vmem>>, vector<1x128xf32>,
    return
  }
  func.func @transform_0(%arg0: i32) -> (i32, i32) {
    %c0_i32 = arith.constant 0 : i32
    %c0_i32_0 = arith.constant 0 : i32
    return %c0_i32, %arg0 : i32, i32
  }
  func.func @transform_1(%arg0: i32) -> (i32, i32) {
    %c0_i32 = arith.constant 0 : i32
    %c0_i32_0 = arith.constant 0 : i32
    return %c0_i32, %arg0 : i32, i32
  }
  func.func @transform_2(%arg0: i32) -> (i32, i32) {
    %c0_i32 = arith.constant 0 : i32
    %c0_i32_0 = arith.constant 0 : i32
    %c0_i32_1 = arith.constant 0 : i32
    return %c0_i32, %c0_i32_0 : i32, i32
  }
  func.func @transform_3(%arg0: i32) -> (i32, i32) {
    %c0_i32 = arith.constant 0 : i32
    %c0_i32_0 = arith.constant 0 : i32
    %c0_i32_1 = arith.constant 0 : i32
    return %c0_i32, %c0_i32_0 : i32, i32
  }
  func.func @transform_4(%arg0: i32) -> (i32, i32) {
    %c0_i32 = arith.constant 0 : i32
    %c0_i32_0 = arith.constant 0 : i32
    %c0_i32_1 = arith.constant 0 : i32
    return %c0_i32, %c0_i32_0 : i32, i32
  }
  func.func @transform_5(%arg0: i32) -> (i32, i32) {
    %c0_i32 = arith.constant 0 : i32
    %c0_i32_0 = arith.constant 0 : i32
    %c0_i32_1 = arith.constant 0 : i32
    return %c0_i32, %c0_i32_0 : i32, i32
  }
  func.func @transform_6(%arg0: i32) -> (i32, i32) {
    %c0_i32 = arith.constant 0 : i32
    %c0_i32_0 = arith.constant 0 : i32
    %c0_i32_1 = arith.constant 0 : i32
    return %c0_i32, %c0_i32_0 : i32, i32
  }
  func.func @transform_7(%arg0: i32) -> (i32, i32) {
    %c0_i32 = arith.constant 0 : i32
    %c0_i32_0 = arith.constant 0 : i32
    %c0_i32_1 = arith.constant 0 : i32
    return %c0_i32, %c0_i32_0 : i32, i32
  }
  func.func @transform_8(%arg0: i32) -> (i32, i32) {
    %c0_i32 = arith.constant 0 : i32
    %c0_i32_0 = arith.constant 0 : i32
    %c0_i32_1 = arith.constant 0 : i32
    return %c0_i32, %c0_i32_0 : i32, i32
  }
  func.func @transform_9(%arg0: i32) -> (i32, i32) {
    %c0_i32 = arith.constant 0 : i32
    %c0_i32_0 = arith.constant 0 : i32
    return %c0_i32, %arg0 : i32, i32
  }
}

</mosaic_0001>

<llo_original>
// kernel: discriminator_forward_fm.1
$region0: #{discriminator_forward_fm.1}
  #allocation0 [shape = 'u32[]', space=smem, size = 0x4, offset = 0x4, fixed_abs, tag = 'smem constant byte address 0x4 - core index']
  #allocation1 [shape = 'u32[144,128]{1,0:T(1,128)}', space=vmem, size = 0x12000, scoped, tag = 'internal scratch']
  #allocation2 [shape = 'f32[1,1]{1,0:T(1,128)S(1)}', space=vmem, size = 0x200, scoped, tag = 'scoped memory for discriminator_forward_fm.1']
  %s0 = inlined_call_operand.vmem [shape: f32[2,256], index: 0, kind: input, shape index: {}]
  %s1 = inlined_call_operand.vmem [shape: s8[16,256], index: 1, kind: input, shape index: {}]
  %s2 = inlined_call_operand.vmem [shape: f32[64,2], index: 2, kind: input, shape index: {}]
  %s3 = inlined_call_operand.vmem [shape: f32[64,16], index: 3, kind: input, shape index: {}]
  %s4 = inlined_call_operand.vmem [shape: f32[64,1], index: 4, kind: input, shape index: {}]
  %s5 = inlined_call_operand.vmem [shape: f32[64,64], index: 5, kind: input, shape index: {}]
  %s6 = inlined_call_operand.vmem [shape: f32[64,1], index: 6, kind: input, shape index: {}]
  %s7 = inlined_call_operand.vmem [shape: f32[1,64], index: 7, kind: input, shape index: {}]
  %s8 = inlined_call_operand.<no memory space> [shape: f32[1,1], index: 8, kind: input, shape index: {}]
  %s9 = inlined_call_operand.hbm [shape: f32[1,256], index: 9, kind: output, shape index: {}]
  %s10 = sld [smem:[#allocation0]]
  $region103: #{discriminator_forward_fm.1} parent=0
    _
  %s12 = ssub.s32 1, %s10
  %s13 = scalar_select 0, %s12, %s10
  %v14 = vstv %s8
  %15 = vst [vmem:[#allocation2] sm:$0x1] %v14
  $region1: #{discriminator_forward_fm.1} parent=0
    #allocation3 [shape = 'u8[4096]{0}', space=vmem, size = 0x1000, scoped, tag = 'input window, operand 1']
    #allocation4 [shape = 'u8[1024]{0}', space=vmem, size = 0x400, scoped, tag = 'output window, operand 0']
    #allocation5 [shape = 's32[2]{0}', space=sflag, size = 0x8, scoped, tag = 'scoped memory for discriminator_forward_fm.1']
    %16 = vsyncpa [#allocation5], 0
    %s17 = scalar_lea.sflag [#allocation5], 1
    %18 = vsyncpa %s17, 0
    loop: start=0, step=1, limit=4
    $region2: #{discriminator_forward_fm.1} parent=1 // loop_pre_header
      _
    $region3: #{discriminator_forward_fm.1} parent=1 // loop_header
      %s20 = sphi 0, %s24
      %p21 = scmp.ge.s32.totalorder %s20, 4
      %s30 = sphi 0, %s32
      %s33 = sphi 0, %s30
      %s34 = sphi 0, %s33
      %s50 = sphi 0, %s34
      %s56 = sphi 0, %s58
      %s59 = sphi 0, %s56
      %s60 = sphi 0, %s59
      %s76 = sphi 0, %s60
      %s80 = sphi 0, %s80
      %s82 = sphi 0, %s80
      %s83 = sphi 0, %s82
      %s97 = sphi 0, %s83
      %s101 = sphi 0, %s101
      %s103 = sphi 0, %s101
      %s104 = sphi 0, %s103
      %s118 = sphi 0, %s104
      %s122 = sphi 0, %s122
      %s124 = sphi 0, %s122
      %s125 = sphi 0, %s124
      %s139 = sphi 0, %s125
      %s143 = sphi 0, %s143
      %s145 = sphi 0, %s143
      %s146 = sphi 0, %s145
      %s160 = sphi 0, %s146
      %s164 = sphi 0, %s164
      %s166 = sphi 0, %s164
      %s167 = sphi 0, %s166
      %s181 = sphi 0, %s167
      %s185 = sphi 0, %s185
      %s187 = sphi 0, %s185
      %s188 = sphi 0, %s187
      %s202 = sphi 0, %s188
      %s206 = sphi 0, %s206
      %s208 = sphi 0, %s206
      %s209 = sphi 0, %s208
      %s223 = sphi 0, %s209
      %s229 = sphi 0, %s231
      %s232 = sphi 0, %s229
      %s233 = sphi 0, %s232
      %s249 = sphi 0, %s233
    $region4: #{discriminator_forward_fm.1} parent=1 // loop_header_branch
      %23 = sbr.rel (%p21) target = $region8
    $region5: #{discriminator_forward_fm.1} parent=1 // loop_body
      %s25 = ssub.s32 %s20, 1
      %s26 = ssub.s32 %s20, 2
      %s27 = sadd.s32 %s20, 1
      %s28 = ssub.s32 %s20, %s27
      %p29 = scmp.eq.s32.totalorder %s28, 0
      %s31 = sadd.s32 %s30, 1
      %s32 = scalar_select %p29, %s30, %s31
      %p35 = pneg %p29
      %p36 = scmp.eq.s32.totalorder %s20, 1
      %p37 = por %p35, %p36
      %p38 = scmp.ne.s32.totalorder %s30, %s33
      %p39 = scmp.eq.s32.totalorder %s20, 0
      %p40 = por %p38, %p39
      %p41 = scmp.ne.s32.totalorder %s30, %s33
      %p42 = scmp.eq.s32.totalorder %s25, 1
      %p43 = por %p41, %p42
      %p44 = scmp.ne.s32.totalorder %s33, %s34
      %p45 = scmp.eq.s32.totalorder %s25, 0
      %p46 = por %p44, %p45
      %p47 = scmp.ne.s32.totalorder %s33, %s34
      %p48 = scmp.eq.s32.totalorder %s26, 1
      %p49 = por %p47, %p48
      %p51 = scmp.ne.s32.totalorder %s34, %s50
      %p52 = scmp.eq.s32.totalorder %s26, 0
      %p53 = por %p51, %p52
      %s54 = ssub.s32 %s20, %s27
      %p55 = scmp.eq.s32.totalorder %s54, 0
      %s57 = sadd.s32 %s56, 1
      %s58 = scalar_select %p55, %s56, %s57
      %p61 = pneg %p55
      %p62 = scmp.eq.s32.totalorder %s20, 1
      %p63 = por %p61, %p62
      %p64 = scmp.ne.s32.totalorder %s56, %s59
      %p65 = scmp.eq.s32.totalorder %s20, 0
      %p66 = por %p64, %p65
      %p67 = scmp.ne.s32.totalorder %s56, %s59
      %p68 = scmp.eq.s32.totalorder %s25, 1
      %p69 = por %p67, %p68
      %p70 = scmp.ne.s32.totalorder %s59, %s60
      %p71 = scmp.eq.s32.totalorder %s25, 0
      %p72 = por %p70, %p71
      %p73 = scmp.ne.s32.totalorder %s59, %s60
      %p74 = scmp.eq.s32.totalorder %s26, 1
      %p75 = por %p73, %p74
      %p77 = scmp.ne.s32.totalorder %s60, %s76
      %p78 = scmp.eq.s32.totalorder %s26, 0
      %p79 = por %p77, %p78
      %s81 = sadd.s32 %s80, 1
      %p84 = scmp.eq.s32.totalorder %s20, 1
      %p85 = scmp.ne.s32.totalorder %s80, %s82
      %p86 = scmp.eq.s32.totalorder %s20, 0
      %p87 = por %p85, %p86
      %p88 = scmp.ne.s32.totalorder %s80, %s82
      %p89 = scmp.eq.s32.totalorder %s25, 1
      %p90 = por %p88, %p89
      %p91 = scmp.ne.s32.totalorder %s82, %s83
      %p92 = scmp.eq.s32.totalorder %s25, 0
      %p93 = por %p91, %p92
      %p94 = scmp.ne.s32.totalorder %s82, %s83
      %p95 = scmp.eq.s32.totalorder %s26, 1
      %p96 = por %p94, %p95
      %p98 = scmp.ne.s32.totalorder %s83, %s97
      %p99 = scmp.eq.s32.totalorder %s26, 0
      %p100 = por %p98, %p99
      %s102 = sadd.s32 %s101, 1
      %p105 = scmp.eq.s32.totalorder %s20, 1
      %p106 = scmp.ne.s32.totalorder %s101, %s103
      %p107 = scmp.eq.s32.totalorder %s20, 0
      %p108 = por %p106, %p107
      %p109 = scmp.ne.s32.totalorder %s101, %s103
      %p110 = scmp.eq.s32.totalorder %s25, 1
      %p111 = por %p109, %p110
      %p112 = scmp.ne.s32.totalorder %s103, %s104
      %p113 = scmp.eq.s32.totalorder %s25, 0
      %p114 = por %p112, %p113
      %p115 = scmp.ne.s32.totalorder %s103, %s104
      %p116 = scmp.eq.s32.totalorder %s26, 1
      %p117 = por %p115, %p116
      %p119 = scmp.ne.s32.totalorder %s104, %s118
      %p120 = scmp.eq.s32.totalorder %s26, 0
      %p121 = por %p119, %p120
      %s123 = sadd.s32 %s122, 1
      %p126 = scmp.eq.s32.totalorder %s20, 1
      %p127 = scmp.ne.s32.totalorder %s122, %s124
      %p128 = scmp.eq.s32.totalorder %s20, 0
      %p129 = por %p127, %p128
      %p130 = scmp.ne.s32.totalorder %s122, %s124
      %p131 = scmp.eq.s32.totalorder %s25, 1
      %p132 = por %p130, %p131
      %p133 = scmp.ne.s32.totalorder %s124, %s125
      %p134 = scmp.eq.s32.totalorder %s25, 0
      %p135 = por %p133, %p134
      %p136 = scmp.ne.s32.totalorder %s124, %s125
      %p137 = scmp.eq.s32.totalorder %s26, 1
      %p138 = por %p136, %p137
      %p140 = scmp.ne.s32.totalorder %s125, %s139
      %p141 = scmp.eq.s32.totalorder %s26, 0
      %p142 = por %p140, %p141
      %s144 = sadd.s32 %s143, 1
      %p147 = scmp.eq.s32.totalorder %s20, 1
      %p148 = scmp.ne.s32.totalorder %s143, %s145
      %p149 = scmp.eq.s32.totalorder %s20, 0
      %p150 = por %p148, %p149
      %p151 = scmp.ne.s32.totalorder %s143, %s145
      %p152 = scmp.eq.s32.totalorder %s25, 1
      %p153 = por %p151, %p152
      %p154 = scmp.ne.s32.totalorder %s145, %s146
      %p155 = scmp.eq.s32.totalorder %s25, 0
      %p156 = por %p154, %p155
      %p157 = scmp.ne.s32.totalorder %s145, %s146
      %p158 = scmp.eq.s32.totalorder %s26, 1
      %p159 = por %p157, %p158
      %p161 = scmp.ne.s32.totalorder %s146, %s160
      %p162 = scmp.eq.s32.totalorder %s26, 0
      %p163 = por %p161, %p162
      %s165 = sadd.s32 %s164, 1
      %p168 = scmp.eq.s32.totalorder %s20, 1
      %p169 = scmp.ne.s32.totalorder %s164, %s166
      %p170 = scmp.eq.s32.totalorder %s20, 0
      %p171 = por %p169, %p170
      %p172 = scmp.ne.s32.totalorder %s164, %s166
      %p173 = scmp.eq.s32.totalorder %s25, 1
      %p174 = por %p172, %p173
      %p175 = scmp.ne.s32.totalorder %s166, %s167
      %p176 = scmp.eq.s32.totalorder %s25, 0
      %p177 = por %p175, %p176
      %p178 = scmp.ne.s32.totalorder %s166, %s167
      %p179 = scmp.eq.s32.totalorder %s26, 1
      %p180 = por %p178, %p179
      %p182 = scmp.ne.s32.totalorder %s167, %s181
      %p183 = scmp.eq.s32.totalorder %s26, 0
      %p184 = por %p182, %p183
      %s186 = sadd.s32 %s185, 1
      %p189 = scmp.eq.s32.totalorder %s20, 1
      %p190 = scmp.ne.s32.totalorder %s185, %s187
      %p191 = scmp.eq.s32.totalorder %s20, 0
      %p192 = por %p190, %p191
      %p193 = scmp.ne.s32.totalorder %s185, %s187
      %p194 = scmp.eq.s32.totalorder %s25, 1
      %p195 = por %p193, %p194
      %p196 = scmp.ne.s32.totalorder %s187, %s188
      %p197 = scmp.eq.s32.totalorder %s25, 0
      %p198 = por %p196, %p197
      %p199 = scmp.ne.s32.totalorder %s187, %s188
      %p200 = scmp.eq.s32.totalorder %s26, 1
      %p201 = por %p199, %p200
      %p203 = scmp.ne.s32.totalorder %s188, %s202
      %p204 = scmp.eq.s32.totalorder %s26, 0
      %p205 = por %p203, %p204
      %s207 = sadd.s32 %s206, 1
      %p210 = scmp.eq.s32.totalorder %s20, 1
      %p211 = scmp.ne.s32.totalorder %s206, %s208
      %p212 = scmp.eq.s32.totalorder %s20, 0
      %p213 = por %p211, %p212
      %p214 = scmp.ne.s32.totalorder %s206, %s208
      %p215 = scmp.eq.s32.totalorder %s25, 1
      %p216 = por %p214, %p215
      %p217 = scmp.ne.s32.totalorder %s208, %s209
      %p218 = scmp.eq.s32.totalorder %s25, 0
      %p219 = por %p217, %p218
      %p220 = scmp.ne.s32.totalorder %s208, %s209
      %p221 = scmp.eq.s32.totalorder %s26, 1
      %p222 = por %p220, %p221
      %p224 = scmp.ne.s32.totalorder %s209, %s223
      %p225 = scmp.eq.s32.totalorder %s26, 0
      %p226 = por %p224, %p225
      %s227 = ssub.s32 %s20, %s27
      %p228 = scmp.eq.s32.totalorder %s227, 0
      %s230 = sadd.s32 %s229, 1
      %s231 = scalar_select %p228, %s229, %s230
      %p234 = pneg %p228
      %p235 = scmp.eq.s32.totalorder %s20, 1
      %p236 = por %p234, %p235
      %p237 = scmp.ne.s32.totalorder %s229, %s232
      %p238 = scmp.eq.s32.totalorder %s20, 0
      %p239 = por %p237, %p238
      %p240 = scmp.ne.s32.totalorder %s229, %s232
      %p241 = scmp.eq.s32.totalorder %s25, 1
      %p242 = por %p240, %p241
      %p243 = scmp.ne.s32.totalorder %s232, %s233
      %p244 = scmp.eq.s32.totalorder %s25, 0
      %p245 = por %p243, %p244
      %p246 = scmp.ne.s32.totalorder %s232, %s233
      %p247 = scmp.eq.s32.totalorder %s26, 1
      %p248 = por %p246, %p247
      %p250 = scmp.ne.s32.totalorder %s233, %s249
      %p251 = scmp.eq.s32.totalorder %s26, 0
      %p252 = por %p250, %p251
      %p253 = scmp.le.s32.totalorder 1, %s20
      %p254 = scmp.lt.s32.totalorder %s20, 3
      %p255 = pnand %p253, %p254
      %p256 = pneg %p255
      // Predicated region
      $region9: #{discriminator_forward_fm.1} parent=5 // pred_check
        _
      $region10: #{discriminator_forward_fm.1} parent=5 // pred_check_branch
        %258 = sbr.rel (%p255) target = $region12
      $region11: #{discriminator_forward_fm.1} parent=5 // pred_region
        %s259 = ssub.s32 %s20, 1
        // Predicated region
        $region13: #{discriminator_forward_fm.1} parent=11 // pred_check
          %p260 = pneg %p93
        $region14: #{discriminator_forward_fm.1} parent=11 // pred_check_branch
          %262 = sbr.rel (%p260) target = $region16
        $region15: #{discriminator_forward_fm.1} parent=11 // pred_region
          _
        $region16: #{discriminator_forward_fm.1} parent=11 // pred_fallthru
          _
        // Predicated region
        $region17: #{discriminator_forward_fm.1} parent=11 // pred_check
          %p263 = pneg %p114
        $region18: #{discriminator_forward_fm.1} parent=11 // pred_check_branch
          %265 = sbr.rel (%p263) target = $region20
        $region19: #{discriminator_forward_fm.1} parent=11 // pred_region
          _
        $region20: #{discriminator_forward_fm.1} parent=11 // pred_fallthru
          _
        // Predicated region
        $region21: #{discriminator_forward_fm.1} parent=11 // pred_check
          %p266 = pneg %p135
        $region22: #{discriminator_forward_fm.1} parent=11 // pred_check_branch
          %268 = sbr.rel (%p266) target = $region24
        $region23: #{discriminator_forward_fm.1} parent=11 // pred_region
          _
        $region24: #{discriminator_forward_fm.1} parent=11 // pred_fallthru
          _
        // Predicated region
        $region25: #{discriminator_forward_fm.1} parent=11 // pred_check
          %p269 = pneg %p156
        $region26: #{discriminator_forward_fm.1} parent=11 // pred_check_branch
          %271 = sbr.rel (%p269) target = $region28
        $region27: #{discriminator_forward_fm.1} parent=11 // pred_region
          _
        $region28: #{discriminator_forward_fm.1} parent=11 // pred_fallthru
          _
        // Predicated region
        $region29: #{discriminator_forward_fm.1} parent=11 // pred_check
          %p272 = pneg %p177
        $region30: #{discriminator_forward_fm.1} parent=11 // pred_check_branch
          %274 = sbr.rel (%p272) target = $region32
        $region31: #{discriminator_forward_fm.1} parent=11 // pred_region
          _
        $region32: #{discriminator_forward_fm.1} parent=11 // pred_fallthru
          _
        // Predicated region
        $region33: #{discriminator_forward_fm.1} parent=11 // pred_check
          %p275 = pneg %p198
        $region34: #{discriminator_forward_fm.1} parent=11 // pred_check_branch
          %277 = sbr.rel (%p275) target = $region36
        $region35: #{discriminator_forward_fm.1} parent=11 // pred_region
          _
        $region36: #{discriminator_forward_fm.1} parent=11 // pred_fallthru
          _
        // Predicated region
        $region37: #{discriminator_forward_fm.1} parent=11 // pred_check
          %p278 = pneg %p219
        $region38: #{discriminator_forward_fm.1} parent=11 // pred_check_branch
          %280 = sbr.rel (%p278) target = $region40
        $region39: #{discriminator_forward_fm.1} parent=11 // pred_region
          _
        $region40: #{discriminator_forward_fm.1} parent=11 // pred_fallthru
          _
      $region12: #{discriminator_forward_fm.1} parent=5 // pred_fallthru
        _
      %p281 = scmp.lt.s32.totalorder %s20, 2
      // Predicated region
      $region41: #{discriminator_forward_fm.1} parent=5 // pred_check
        %p282 = pneg %p281
      $region42: #{discriminator_forward_fm.1} parent=5 // pred_check_branch
        %284 = sbr.rel (%p282) target = $region44
      $region43: #{discriminator_forward_fm.1} parent=5 // pred_region
        // Predicated region
        $region45: #{discriminator_forward_fm.1} parent=43 // pred_check
          %p285 = pneg %p40
        $region46: #{discriminator_forward_fm.1} parent=43 // pred_check_branch
          %287 = sbr.rel (%p285) target = $region48
        $region47: #{discriminator_forward_fm.1} parent=43 // pred_region
          %p288 = scmp.lt.s32.totalorder %s20, 1
          %s289 = scalar_select %p288, %s20, 1
          %s290 = smul.addr %s289, 2
          %s291 = scalar_lea.vmem %s0, %s290
        $region48: #{discriminator_forward_fm.1} parent=43 // pred_fallthru
          _
        // Predicated region
        $region49: #{discriminator_forward_fm.1} parent=43 // pred_check
          %p292 = pneg %p66
        $region50: #{discriminator_forward_fm.1} parent=43 // pred_check_branch
          %294 = sbr.rel (%p292) target = $region52
        $region51: #{discriminator_forward_fm.1} parent=43 // pred_region
          %s295 = sand.u32 %s56, 1
          %s296 = sand.u32 %s56, 1
          %s297 = smul.addr %s296, 4
          %s298 = scalar_lea.vmem [#allocation3], %s297
          %s299 = smul.addr %s20, 2
          %s300 = scalar_lea.vmem %s1, %s299
          // Predicated region
          $region53: #{discriminator_forward_fm.1} parent=51 // pred_check
            _
          $region54: #{discriminator_forward_fm.1} parent=51 // pred_check_branch
            %302 = sbr.rel (0) target = $region56
          $region55: #{discriminator_forward_fm.1} parent=51 // pred_region
            // Predicated region
            $region57: #{discriminator_forward_fm.1} parent=55 // pred_check
              _
            $region58: #{discriminator_forward_fm.1} parent=55 // pred_check_branch
              %304 = sbr.rel target = $region60
            $region59: #{discriminator_forward_fm.1} parent=55 // pred_region
              // Predicated region
              $region72: #{discriminator_forward_fm.1} parent=59 // pred_check
                _
              $region73: #{discriminator_forward_fm.1} parent=59 // pred_check_branch
                %321 = sbr.rel (0) target = $region75
              $region74: #{discriminator_forward_fm.1} parent=59 // pred_region
                loop: start=0, step=1, limit=1
                $region76: #{discriminator_forward_fm.1} parent=74 // loop_pre_header
                  _
                $region77: #{discriminator_forward_fm.1} parent=74 // loop_header
                  %s324 = sphi 0, %s328
                  %p325 = scmp.ge.s32.totalorder %s324, 1
                  %s329 = sphi %s300, %s300
                  %s330 = sphi %s298, %s298
                $region78: #{discriminator_forward_fm.1} parent=74 // loop_header_branch
                  %327 = sbr.rel (%p325) target = $region82
                $region79: #{discriminator_forward_fm.1} parent=74 // loop_body
                  %v331 = vld [vmem:[%s329] sm:$0x3]
                  %332 = vst [vmem:[%s330] sm:$0x3] %v331
                  %v333 = vld [vmem:[%s329 + $0x4] sm:$0x3]
                  %334 = vst [vmem:[%s330 + $0x2] sm:$0x3] %v333
                $region80: #{discriminator_forward_fm.1} parent=74 // loop_footer
                  %s328 = sadd.s32 1, %s324
                $region81: #{discriminator_forward_fm.1} parent=74 // loop_footer_branch
                  %323 = sbr.rel target = $region77
                $region82: #{discriminator_forward_fm.1} parent=74 // loop_exit
                  _
              $region75: #{discriminator_forward_fm.1} parent=59 // pred_fallthru
                _
            $region60: #{discriminator_forward_fm.1} parent=55 // pred_fallthru
              _
            // Predicated region
            $region61: #{discriminator_forward_fm.1} parent=55 // pred_check
              _
            $region62: #{discriminator_forward_fm.1} parent=55 // pred_check_branch
              %306 = sbr.rel (0) target = $region64
            $region63: #{discriminator_forward_fm.1} parent=55 // pred_region
              loop: start=0, step=1, limit=1
              $region65: #{discriminator_forward_fm.1} parent=63 // loop_pre_header
                _
              $region66: #{discriminator_forward_fm.1} parent=63 // loop_header
                %s309 = sphi 0, %s313
                %p310 = scmp.ge.s32.totalorder %s309, 1
                %s314 = sphi %s300, %s300
                %s315 = sphi %s298, %s298
              $region67: #{discriminator_forward_fm.1} parent=63 // loop_header_branch
                %312 = sbr.rel (%p310) target = $region71
              $region68: #{discriminator_forward_fm.1} parent=63 // loop_body
                %v316 = vld [vmem:[%s314] sm:$0x3]
                %317 = vst [vmem:[%s315] sm:$0x3] %v316
                %v318 = vld [vmem:[%s314 + $0x4] sm:$0x3]
                %319 = vst [vmem:[%s315 + $0x2] sm:$0x3] %v318
              $region69: #{discriminator_forward_fm.1} parent=63 // loop_footer
                %s313 = sadd.s32 1, %s309
              $region70: #{discriminator_forward_fm.1} parent=63 // loop_footer_branch
                %308 = sbr.rel target = $region66
              $region71: #{discriminator_forward_fm.1} parent=63 // loop_exit
                _
            $region64: #{discriminator_forward_fm.1} parent=55 // pred_fallthru
              _
          $region56: #{discriminator_forward_fm.1} parent=51 // pred_fallthru
            _
          %335 = vnop
        $region52: #{discriminator_forward_fm.1} parent=43 // pred_fallthru
          _
      $region44: #{discriminator_forward_fm.1} parent=5 // pred_fallthru
        _
      %p336 = scmp.le.s32.totalorder 1, %s20
      %p337 = scmp.lt.s32.totalorder %s20, 3
      %p338 = pnand %p336, %p337
      %p339 = pneg %p338
      // Predicated region
      $region83: #{discriminator_forward_fm.1} parent=5 // pred_check
        _
      $region84: #{discriminator_forward_fm.1} parent=5 // pred_check_branch
        %341 = sbr.rel (%p338) target = $region86
      $region85: #{discriminator_forward_fm.1} parent=5 // pred_region
        %s342 = ssub.s32 %s20, 1
        %s343 = sand.u32 %s59, 1
        %s344 = sand.u32 %s59, 1
        %s345 = smul.addr %s344, 4
        %s346 = scalar_lea.vmem [#allocation3], %s345
        // Predicated region
        $region87: #{discriminator_forward_fm.1} parent=85 // pred_check
          %p347 = pneg %p72
        $region88: #{discriminator_forward_fm.1} parent=85 // pred_check_branch
          %349 = sbr.rel (%p347) target = $region90
        $region89: #{discriminator_forward_fm.1} parent=85 // pred_region
          _
        $region90: #{discriminator_forward_fm.1} parent=85 // pred_fallthru
          _
        %p350 = scmp.lt.s32.totalorder %s25, 1
        %s351 = scalar_select %p350, %s25, 1
        %s352 = smul.addr %s351, 2
        %s353 = scalar_lea.vmem %s0, %s352
        %p354 = pneg %p46
        %p355 = pneg %p43
        %s356 = sand.u32 %s59, 1
        %s357 = sand.u32 %s59, 1
        %s358 = smul.addr %s357, 4
        %s359 = scalar_lea.vmem [#allocation3], %s358
        %p360 = pneg %p72
        %p361 = pneg %p69
        %p362 = pneg %p93
        %p363 = pneg %p90
        %p364 = pneg %p114
        %p365 = pneg %p111
        %p366 = pneg %p135
        %p367 = pneg %p132
        %p368 = pneg %p156
        %p369 = pneg %p153
        %p370 = pneg %p177
        %p371 = pneg %p174
        %p372 = pneg %p198
        %p373 = pneg %p195
        %p374 = pneg %p219
        %p375 = pneg %p216
        %p376 = pneg %p245
        %p377 = pneg %p242
        %s378 = sand.u32 %s232, 1
        %s379 = scalar_lea.sflag [#allocation5], %s378
        %s380 = sand.u32 %s232, 1
        %s381 = scalar_lea.vmem [#allocation4], %s380
        %p382 = scmp.lt.s32.totalorder %s25, 1
        %s383 = scalar_select %p382, %s25, 1
        %s384 = smul.addr %s383, 2
        %s385 = scalar_lea.vmem %s0, %s384
        %v386 = vld [vmem:[%s385] sm:$0x3]
        %v387 = vld [vmem:[%s346] sm:$0x3]
        %v388 = vld [vmem:[%s346 + $0x2] sm:$0x3]
        %v389 = vunpack.c.0.s8 %v387
        %v390 = vunpack.c.0.s8 %v388
        %v391 = vcvt.s32.f32 %v389
        %v392 = vcvt.s32.f32 %v390
        %v393 = vld [vmem:[%s3] sm:$0xff]
        %v394 = vld [vmem:[%s3 + $0x8] sm:$0xff]
        %v395 = vld [vmem:[%s3 + $0x10] sm:$0xff]
        %v396 = vld [vmem:[%s3 + $0x18] sm:$0xff]
        %v397 = vld [vmem:[%s3 + $0x20] sm:$0xff]
        %v398 = vld [vmem:[%s3 + $0x28] sm:$0xff]
        %v399 = vld [vmem:[%s3 + $0x30] sm:$0xff]
        %v400 = vld [vmem:[%s3 + $0x38] sm:$0xff]
        %v401 = vld [vmem:[%s2] sm:$0xff]
        %v402 = vld [vmem:[%s2 + $0x8] sm:$0xff]
        %v403 = vld [vmem:[%s2 + $0x10] sm:$0xff]
        %v404 = vld [vmem:[%s2 + $0x18] sm:$0xff]
        %v405 = vld [vmem:[%s2 + $0x20] sm:$0xff]
        %v406 = vld [vmem:[%s2 + $0x28] sm:$0xff]
        %v407 = vld [vmem:[%s2 + $0x30] sm:$0xff]
        %v408 = vld [vmem:[%s2 + $0x38] sm:$0xff]
        %vm409 = vcmask 15360
        %v411 = vsel %vm409, %v401, 0
        %v414 = vsel %vm409, %v402, 0
        %v417 = vsel %vm409, %v403, 0
        %v420 = vsel %vm409, %v404, 0
        %v423 = vsel %vm409, %v405, 0
        %v426 = vsel %vm409, %v406, 0
        %v429 = vsel %vm409, %v407, 0
        %v432 = vsel %vm409, %v408, 0
        %vm434 = vcmask 1041408
        %v436 = vsel %vm434, %v386, 0
        %438 = vmatprep.subr.mxu0 0.0
        %439 = vmatpush1.msra.mxu0 %v436
        %440 = vmatprep.subr.mxu0 0.0
        %441 = vmatpush1.msra.mxu0 0.0
        %442 = vmatprep.subr.mxu0 0.0
        %443 = vmatpush1.msra.mxu0 0.0
        %444 = vmatprep.subr.mxu0 0.0
        %445 = vmatpush1.msra.mxu0 0.0
        %446 = vmatprep.subr.mxu0 0.0
        %447 = vmatpush1.msra.mxu0 0.0
        %448 = vmatprep.subr.mxu0 0.0
        %449 = vmatpush1.msra.mxu0 0.0
        %450 = vmatprep.subr.mxu0 0.0
        %451 = vmatpush1.msra.mxu0 0.0
        %452 = vmatprep.subr.mxu0 0.0
        %453 = vmatpush1.msra.mxu0 0.0
        %454 = vmatprep.subr.mxu0 0.0
        %455 = vmatpush1.msra.mxu0 0.0
        %456 = vmatprep.subr.mxu0 0.0
        %457 = vmatpush1.msra.mxu0 0.0
        %458 = vmatprep.subr.mxu0 0.0
        %459 = vmatpush1.msra.mxu0 0.0
        %460 = vmatprep.subr.mxu0 0.0
        %461 = vmatpush1.msra.mxu0 0.0
        %462 = vmatprep.subr.mxu0 0.0
        %463 = vmatpush1.msra.mxu0 0.0
        %464 = vmatprep.subr.mxu0 0.0
        %465 = vmatpush1.msra.mxu0 0.0
        %466 = vmatprep.subr.mxu0 0.0
        %467 = vmatpush1.msra.mxu0 0.0
        %468 = vmatprep.subr.mxu0 0.0
        %469 = vmatpush1.msra.mxu0 0.0
        %470 = vmatprep.subr.mxu0 0.0
        %471 = vmatpush1.msra.mxu0 0.0
        %472 = vmatprep.subr.mxu0 0.0
        %473 = vmatpush1.msra.mxu0 0.0
        %474 = vmatprep.subr.mxu0 0.0
        %475 = vmatpush1.msra.mxu0 0.0
        %476 = vmatprep.subr.mxu0 0.0
        %477 = vmatpush1.msra.mxu0 0.0
        %478 = vmatprep.subr.mxu0 0.0
        %479 = vmatpush1.msra.mxu0 0.0
        %480 = vmatprep.subr.mxu0 0.0
        %481 = vmatpush1.msra.mxu0 0.0
        %482 = vmatprep.subr.mxu0 0.0
        %483 = vmatpush1.msra.mxu0 0.0
        %484 = vmatprep.subr.mxu0 0.0
        %485 = vmatpush1.msra.mxu0 0.0
        %486 = vmatprep.subr.mxu0 0.0
        %487 = vmatpush1.msra.mxu0 0.0
        %488 = vmatprep.subr.mxu0 0.0
        %489 = vmatpush1.msra.mxu0 0.0
        %490 = vmatprep.subr.mxu0 0.0
        %491 = vmatpush1.msra.mxu0 0.0
        %492 = vmatprep.subr.mxu0 0.0
        %493 = vmatpush1.msra.mxu0 0.0
        %494 = vmatprep.subr.mxu0 0.0
        %495 = vmatpush1.msra.mxu0 0.0
        %496 = vmatprep.subr.mxu0 0.0
        %497 = vmatpush1.msra.mxu0 0.0
        %498 = vmatprep.subr.mxu0 0.0
        %499 = vmatpush1.msra.mxu0 0.0
        %500 = vmatprep.subr.mxu0 0.0
        %501 = vmatpush1.msra.mxu0 0.0
        %502 = vmatprep.mubr.f32.mxu0 0.0
        %503 = vmatmul.mubr.f32.gmra.mrb[0].mxu0 %v411
        %v504 = vpop.f32.mrb[0].mxu0
        %v505 = vadd.f32 0.0, %v504
        %v506 = vpop.f32.mrb[0].mxu0
        %507 = vmatprep.mubr.f32.mxu0 0.0
        %508 = vmatmul.mubr.f32.gmra.mrb[0].mxu0 %v414
        %v509 = vpop.f32.mrb[0].mxu0
        %v510 = vadd.f32 0.0, %v509
        %v511 = vpop.f32.mrb[0].mxu0
        %512 = vmatprep.mubr.f32.mxu0 0.0
        %513 = vmatmul.mubr.f32.gmra.mrb[0].mxu0 %v417
        %v514 = vpop.f32.mrb[0].mxu0
        %v515 = vadd.f32 0.0, %v514
        %v516 = vpop.f32.mrb[0].mxu0
        %517 = vmatprep.mubr.f32.mxu0 0.0
        %518 = vmatmul.mubr.f32.gmra.mrb[0].mxu0 %v420
        %v519 = vpop.f32.mrb[0].mxu0
        %v520 = vadd.f32 0.0, %v519
        %v521 = vpop.f32.mrb[0].mxu0
        %522 = vmatprep.mubr.f32.mxu0 0.0
        %523 = vmatmul.mubr.f32.gmra.mrb[0].mxu0 %v423
        %v524 = vpop.f32.mrb[0].mxu0
        %v525 = vadd.f32 0.0, %v524
        %v526 = vpop.f32.mrb[0].mxu0
        %527 = vmatprep.mubr.f32.mxu0 0.0
        %528 = vmatmul.mubr.f32.gmra.mrb[0].mxu0 %v426
        %v529 = vpop.f32.mrb[0].mxu0
        %v530 = vadd.f32 0.0, %v529
        %v531 = vpop.f32.mrb[0].mxu0
        %532 = vmatprep.mubr.f32.mxu0 0.0
        %533 = vmatmul.mubr.f32.gmra.mrb[0].mxu0 %v429
        %v534 = vpop.f32.mrb[0].mxu0
        %v535 = vadd.f32 0.0, %v534
        %v536 = vpop.f32.mrb[0].mxu0
        %537 = vmatprep.mubr.f32.mxu0 0.0
        %538 = vmatmul.mubr.f32.gmra.mrb[0].mxu0 %v432
        %v539 = vpop.f32.mrb[0].mxu0
        %v540 = vadd.f32 0.0, %v539
        %v541 = vpop.f32.mrb[0].mxu0
        %542 = vdwg.mxu0
        %vm543 = vcmask 130048
        %v545 = vsel %vm543, %v393, 0
        %v548 = vsel %vm543, %v394, 0
        %v551 = vsel %vm543, %v395, 0
        %v554 = vsel %vm543, %v396, 0
        %v557 = vsel %vm543, %v397, 0
        %v560 = vsel %vm543, %v398, 0
        %v563 = vsel %vm543, %v399, 0
        %v566 = vsel %vm543, %v400, 0
        %568 = vmatprep.subr.mxu0 0.0
        %569 = vmatpush1.msra.mxu0 %v391
        %570 = vmatprep.subr.mxu0 0.0
        %571 = vmatpush1.msra.mxu0 %v392
        %572 = vmatprep.subr.mxu0 0.0
        %573 = vmatpush1.msra.mxu0 0.0
        %574 = vmatprep.subr.mxu0 0.0
        %575 = vmatpush1.msra.mxu0 0.0
        %576 = vmatprep.subr.mxu0 0.0
        %577 = vmatpush1.msra.mxu0 0.0
        %578 = vmatprep.subr.mxu0 0.0
        %579 = vmatpush1.msra.mxu0 0.0
        %580 = vmatprep.subr.mxu0 0.0
        %581 = vmatpush1.msra.mxu0 0.0
        %582 = vmatprep.subr.mxu0 0.0
        %583 = vmatpush1.msra.mxu0 0.0
        %584 = vmatprep.subr.mxu0 0.0
        %585 = vmatpush1.msra.mxu0 0.0
        %586 = vmatprep.subr.mxu0 0.0
        %587 = vmatpush1.msra.mxu0 0.0
        %588 = vmatprep.subr.mxu0 0.0
        %589 = vmatpush1.msra.mxu0 0.0
        %590 = vmatprep.subr.mxu0 0.0
        %591 = vmatpush1.msra.mxu0 0.0
        %592 = vmatprep.subr.mxu0 0.0
        %593 = vmatpush1.msra.mxu0 0.0
        %594 = vmatprep.subr.mxu0 0.0
        %595 = vmatpush1.msra.mxu0 0.0
        %596 = vmatprep.subr.mxu0 0.0
        %597 = vmatpush1.msra.mxu0 0.0
        %598 = vmatprep.subr.mxu0 0.0
        %599 = vmatpush1.msra.mxu0 0.0
        %600 = vmatprep.subr.mxu0 0.0
        %601 = vmatpush1.msra.mxu0 0.0
        %602 = vmatprep.subr.mxu0 0.0
        %603 = vmatpush1.msra.mxu0 0.0
        %604 = vmatprep.subr.mxu0 0.0
        %605 = vmatpush1.msra.mxu0 0.0
        %606 = vmatprep.subr.mxu0 0.0
        %607 = vmatpush1.msra.mxu0 0.0
        %608 = vmatprep.subr.mxu0 0.0
        %609 = vmatpush1.msra.mxu0 0.0
        %610 = vmatprep.subr.mxu0 0.0
        %611 = vmatpush1.msra.mxu0 0.0
        %612 = vmatprep.subr.mxu0 0.0
        %613 = vmatpush1.msra.mxu0 0.0
        %614 = vmatprep.subr.mxu0 0.0
        %615 = vmatpush1.msra.mxu0 0.0
        %616 = vmatprep.subr.mxu0 0.0
        %617 = vmatpush1.msra.mxu0 0.0
        %618 = vmatprep.subr.mxu0 0.0
        %619 = vmatpush1.msra.mxu0 0.0
        %620 = vmatprep.subr.mxu0 0.0
        %621 = vmatpush1.msra.mxu0 0.0
        %622 = vmatprep.subr.mxu0 0.0
        %623 = vmatpush1.msra.mxu0 0.0
        %624 = vmatprep.subr.mxu0 0.0
        %625 = vmatpush1.msra.mxu0 0.0
        %626 = vmatprep.subr.mxu0 0.0
        %627 = vmatpush1.msra.mxu0 0.0
        %628 = vmatprep.subr.mxu0 0.0
        %629 = vmatpush1.msra.mxu0 0.0
        %630 = vmatprep.subr.mxu0 0.0
        %631 = vmatpush1.msra.mxu0 0.0
        %632 = vmatprep.mubr.f32.mxu0 0.0
        %633 = vmatmul.mubr.f32.gmra.mrb[0].mxu0 %v545
        %v634 = vpop.f32.mrb[0].mxu0
        %v635 = vadd.f32 %v505, %v634
        %v636 = vpop.f32.mrb[0].mxu0
        %637 = vmatprep.mubr.f32.mxu0 0.0
        %638 = vmatmul.mubr.f32.gmra.mrb[0].mxu0 %v548
        %v639 = vpop.f32.mrb[0].mxu0
        %v640 = vadd.f32 %v510, %v639
        %v641 = vpop.f32.mrb[0].mxu0
        %642 = vmatprep.mubr.f32.mxu0 0.0
        %643 = vmatmul.mubr.f32.gmra.mrb[0].mxu0 %v551
        %v644 = vpop.f32.mrb[0].mxu0
        %v645 = vadd.f32 %v515, %v644
        %v646 = vpop.f32.mrb[0].mxu0
        %647 = vmatprep.mubr.f32.mxu0 0.0
        %648 = vmatmul.mubr.f32.gmra.mrb[0].mxu0 %v554
        %v649 = vpop.f32.mrb[0].mxu0
        %v650 = vadd.f32 %v520, %v649
        %v651 = vpop.f32.mrb[0].mxu0
        %652 = vmatprep.mubr.f32.mxu0 0.0
        %653 = vmatmul.mubr.f32.gmra.mrb[0].mxu0 %v557
        %v654 = vpop.f32.mrb[0].mxu0
        %v655 = vadd.f32 %v525, %v654
        %v656 = vpop.f32.mrb[0].mxu0
        %657 = vmatprep.mubr.f32.mxu0 0.0
        %658 = vmatmul.mubr.f32.gmra.mrb[0].mxu0 %v560
        %v659 = vpop.f32.mrb[0].mxu0
        %v660 = vadd.f32 %v530, %v659
        %v661 = vpop.f32.mrb[0].mxu0
        %662 = vmatprep.mubr.f32.mxu0 0.0
        %663 = vmatmul.mubr.f32.gmra.mrb[0].mxu0 %v563
        %v664 = vpop.f32.mrb[0].mxu0
        %v665 = vadd.f32 %v535, %v664
        %v666 = vpop.f32.mrb[0].mxu0
        %667 = vmatprep.mubr.f32.mxu0 0.0
        %668 = vmatmul.mubr.f32.gmra.mrb[0].mxu0 %v566
        %v669 = vpop.f32.mrb[0].mxu0
        %v670 = vadd.f32 %v540, %v669
        %v671 = vpop.f32.mrb[0].mxu0
        %672 = vdwg.mxu0
        %v673 = vld [vmem:[%s4] sm:$0xff]
        %v674 = vld [vmem:[%s4 + $0x8] sm:$0xff]
        %v675 = vld [vmem:[%s4 + $0x10] sm:$0xff]
        %v676 = vld [vmem:[%s4 + $0x18] sm:$0xff]
        %v677 = vld [vmem:[%s4 + $0x20] sm:$0xff]
        %v678 = vld [vmem:[%s4 + $0x28] sm:$0xff]
        %v679 = vld [vmem:[%s4 + $0x30] sm:$0xff]
        %v680 = vld [vmem:[%s4 + $0x38] sm:$0xff]
        %682 = vset.pattern.permute.xlu0 0
        %683 = vperm.xlu0 %682, %v673
        %v684 = vpop.permute.xlu0 %683
        %687 = vset.pattern.permute.xlu0 0
        %688 = vperm.xlu0 %687, %v674
        %v689 = vpop.permute.xlu0 %688
        %692 = vset.pattern.permute.xlu0 0
        %693 = vperm.xlu0 %692, %v675
        %v694 = vpop.permute.xlu0 %693
        %697 = vset.pattern.permute.xlu0 0
        %698 = vperm.xlu0 %697, %v676
        %v699 = vpop.permute.xlu0 %698
        %702 = vset.pattern.permute.xlu0 0
        %703 = vperm.xlu0 %702, %v677
        %v704 = vpop.permute.xlu0 %703
        %707 = vset.pattern.permute.xlu0 0
        %708 = vperm.xlu0 %707, %v678
        %v709 = vpop.permute.xlu0 %708
        %712 = vset.pattern.permute.xlu0 0
        %713 = vperm.xlu0 %712, %v679
        %v714 = vpop.permute.xlu0 %713
        %717 = vset.pattern.permute.xlu0 0
        %718 = vperm.xlu0 %717, %v680
        %v719 = vpop.permute.xlu0 %718
        %v721 = vadd.f32 %v635, %v684
        %v722 = vadd.f32 %v640, %v689
        %v723 = vadd.f32 %v645, %v694
        %v724 = vadd.f32 %v650, %v699
        %v725 = vadd.f32 %v655, %v704
        %v726 = vadd.f32 %v660, %v709
        %v727 = vadd.f32 %v665, %v714
        %v728 = vadd.f32 %v670, %v719
        %v729 = vmul.f32 %v721, 0.2
        %v730 = vmul.f32 %v722, 0.2
        %v731 = vmul.f32 %v723, 0.2
        %v732 = vmul.f32 %v724, 0.2
        %v733 = vmul.f32 %v725, 0.2
        %v734 = vmul.f32 %v726, 0.2
        %v735 = vmul.f32 %v727, 0.2
        %v736 = vmul.f32 %v728, 0.2
        %v737 = vmax.f32 %v721, %v729
        %v738 = vmax.f32 %v722, %v730
        %v739 = vmax.f32 %v723, %v731
        %v740 = vmax.f32 %v724, %v732
        %v741 = vmax.f32 %v725, %v733
        %v742 = vmax.f32 %v726, %v734
        %v743 = vmax.f32 %v727, %v735
        %v744 = vmax.f32 %v728, %v736
        %v745 = vld [vmem:[%s5] sm:$0xff]
        %v746 = vld [vmem:[%s5 + $0x8] sm:$0xff]
        %v747 = vld [vmem:[%s5 + $0x10] sm:$0xff]
        %v748 = vld [vmem:[%s5 + $0x18] sm:$0xff]
        %v749 = vld [vmem:[%s5 + $0x20] sm:$0xff]
        %v750 = vld [vmem:[%s5 + $0x28] sm:$0xff]
        %v751 = vld [vmem:[%s5 + $0x30] sm:$0xff]
        %v752 = vld [vmem:[%s5 + $0x38] sm:$0xff]
        %v753 = vld [vmem:[%s6] sm:$0xff]
        %v754 = vld [vmem:[%s6 + $0x8] sm:$0xff]
        %v755 = vld [vmem:[%s6 + $0x10] sm:$0xff]
        %v756 = vld [vmem:[%s6 + $0x18] sm:$0xff]
        %v757 = vld [vmem:[%s6 + $0x20] sm:$0xff]
        %v758 = vld [vmem:[%s6 + $0x28] sm:$0xff]
        %v759 = vld [vmem:[%s6 + $0x30] sm:$0xff]
        %v760 = vld [vmem:[%s6 + $0x38] sm:$0xff]
        %762 = vset.pattern.permute.xlu0 0
        %763 = vperm.xlu0 %762, %v753
        %v764 = vpop.permute.xlu0 %763
        %767 = vset.pattern.permute.xlu0 0
        %768 = vperm.xlu0 %767, %v754
        %v769 = vpop.permute.xlu0 %768
        %772 = vset.pattern.permute.xlu0 0
        %773 = vperm.xlu0 %772, %v755
        %v774 = vpop.permute.xlu0 %773
        %777 = vset.pattern.permute.xlu0 0
        %778 = vperm.xlu0 %777, %v756
        %v779 = vpop.permute.xlu0 %778
        %782 = vset.pattern.permute.xlu0 0
        %783 = vperm.xlu0 %782, %v757
        %v784 = vpop.permute.xlu0 %783
        %787 = vset.pattern.permute.xlu0 0
        %788 = vperm.xlu0 %787, %v758
        %v789 = vpop.permute.xlu0 %788
        %792 = vset.pattern.permute.xlu0 0
        %793 = vperm.xlu0 %792, %v759
        %v794 = vpop.permute.xlu0 %793
        %797 = vset.pattern.permute.xlu0 0
        %798 = vperm.xlu0 %797, %v760
        %v799 = vpop.permute.xlu0 %798
        %vm801 = vcmask 523264
        %v803 = vsel %vm801, %v745, 0
        %v806 = vsel %vm801, %v746, 0
        %v809 = vsel %vm801, %v747, 0
        %v812 = vsel %vm801, %v748, 0
        %v815 = vsel %vm801, %v749, 0
        %v818 = vsel %vm801, %v750, 0
        %v821 = vsel %vm801, %v751, 0
        %v824 = vsel %vm801, %v752, 0
        %826 = vmatprep.subr.mxu0 0.0
        %827 = vmatpush1.msra.mxu0 %v737
        %828 = vmatprep.subr.mxu0 0.0
        %829 = vmatpush1.msra.mxu0 %v738
        %830 = vmatprep.subr.mxu0 0.0
        %831 = vmatpush1.msra.mxu0 %v739
        %832 = vmatprep.subr.mxu0 0.0
        %833 = vmatpush1.msra.mxu0 %v740
        %834 = vmatprep.subr.mxu0 0.0
        %835 = vmatpush1.msra.mxu0 %v741
        %836 = vmatprep.subr.mxu0 0.0
        %837 = vmatpush1.msra.mxu0 %v742
        %838 = vmatprep.subr.mxu0 0.0
        %839 = vmatpush1.msra.mxu0 %v743
        %840 = vmatprep.subr.mxu0 0.0
        %841 = vmatpush1.msra.mxu0 %v744
        %842 = vmatprep.subr.mxu0 0.0
        %843 = vmatpush1.msra.mxu0 0.0
        %844 = vmatprep.subr.mxu0 0.0
        %845 = vmatpush1.msra.mxu0 0.0
        %846 = vmatprep.subr.mxu0 0.0
        %847 = vmatpush1.msra.mxu0 0.0
        %848 = vmatprep.subr.mxu0 0.0
        %849 = vmatpush1.msra.mxu0 0.0
        %850 = vmatprep.subr.mxu0 0.0
        %851 = vmatpush1.msra.mxu0 0.0
        %852 = vmatprep.subr.mxu0 0.0
        %853 = vmatpush1.msra.mxu0 0.0
        %854 = vmatprep.subr.mxu0 0.0
        %855 = vmatpush1.msra.mxu0 0.0
        %856 = vmatprep.subr.mxu0 0.0
        %857 = vmatpush1.msra.mxu0 0.0
        %858 = vmatprep.subr.mxu0 0.0
        %859 = vmatpush1.msra.mxu0 0.0
        %860 = vmatprep.subr.mxu0 0.0
        %861 = vmatpush1.msra.mxu0 0.0
        %862 = vmatprep.subr.mxu0 0.0
        %863 = vmatpush1.msra.mxu0 0.0
        %864 = vmatprep.subr.mxu0 0.0
        %865 = vmatpush1.msra.mxu0 0.0
        %866 = vmatprep.subr.mxu0 0.0
        %867 = vmatpush1.msra.mxu0 0.0
        %868 = vmatprep.subr.mxu0 0.0
        %869 = vmatpush1.msra.mxu0 0.0
        %870 = vmatprep.subr.mxu0 0.0
        %871 = vmatpush1.msra.mxu0 0.0
        %872 = vmatprep.subr.mxu0 0.0
        %873 = vmatpush1.msra.mxu0 0.0
        %874 = vmatprep.subr.mxu0 0.0
        %875 = vmatpush1.msra.mxu0 0.0
        %876 = vmatprep.subr.mxu0 0.0
        %877 = vmatpush1.msra.mxu0 0.0
        %878 = vmatprep.subr.mxu0 0.0
        %879 = vmatpush1.msra.mxu0 0.0
        %880 = vmatprep.subr.mxu0 0.0
        %881 = vmatpush1.msra.mxu0 0.0
        %882 = vmatprep.subr.mxu0 0.0
        %883 = vmatpush1.msra.mxu0 0.0
        %884 = vmatprep.subr.mxu0 0.0
        %885 = vmatpush1.msra.mxu0 0.0
        %886 = vmatprep.subr.mxu0 0.0
        %887 = vmatpush1.msra.mxu0 0.0
        %888 = vmatprep.subr.mxu0 0.0
        %889 = vmatpush1.msra.mxu0 0.0
        %890 = vmatprep.mubr.f32.mxu0 0.0
        %891 = vmatmul.mubr.f32.gmra.mrb[0].mxu0 %v803
        %v892 = vpop.f32.mrb[0].mxu0
        %v893 = vadd.f32 %v764, %v892
        %v894 = vpop.f32.mrb[0].mxu0
        %895 = vmatprep.mubr.f32.mxu0 0.0
        %896 = vmatmul.mubr.f32.gmra.mrb[0].mxu0 %v806
        %v897 = vpop.f32.mrb[0].mxu0
        %v898 = vadd.f32 %v769, %v897
        %v899 = vpop.f32.mrb[0].mxu0
        %900 = vmatprep.mubr.f32.mxu0 0.0
        %901 = vmatmul.mubr.f32.gmra.mrb[0].mxu0 %v809
        %v902 = vpop.f32.mrb[0].mxu0
        %v903 = vadd.f32 %v774, %v902
        %v904 = vpop.f32.mrb[0].mxu0
        %905 = vmatprep.mubr.f32.mxu0 0.0
        %906 = vmatmul.mubr.f32.gmra.mrb[0].mxu0 %v812
        %v907 = vpop.f32.mrb[0].mxu0
        %v908 = vadd.f32 %v779, %v907
        %v909 = vpop.f32.mrb[0].mxu0
        %910 = vmatprep.mubr.f32.mxu0 0.0
        %911 = vmatmul.mubr.f32.gmra.mrb[0].mxu0 %v815
        %v912 = vpop.f32.mrb[0].mxu0
        %v913 = vadd.f32 %v784, %v912
        %v914 = vpop.f32.mrb[0].mxu0
        %915 = vmatprep.mubr.f32.mxu0 0.0
        %916 = vmatmul.mubr.f32.gmra.mrb[0].mxu0 %v818
        %v917 = vpop.f32.mrb[0].mxu0
        %v918 = vadd.f32 %v789, %v917
        %v919 = vpop.f32.mrb[0].mxu0
        %920 = vmatprep.mubr.f32.mxu0 0.0
        %921 = vmatmul.mubr.f32.gmra.mrb[0].mxu0 %v821
        %v922 = vpop.f32.mrb[0].mxu0
        %v923 = vadd.f32 %v794, %v922
        %v924 = vpop.f32.mrb[0].mxu0
        %925 = vmatprep.mubr.f32.mxu0 0.0
        %926 = vmatmul.mubr.f32.gmra.mrb[0].mxu0 %v824
        %v927 = vpop.f32.mrb[0].mxu0
        %v928 = vadd.f32 %v799, %v927
        %v929 = vpop.f32.mrb[0].mxu0
        %930 = vdwg.mxu0
        %v931 = vmul.f32 %v893, 0.2
        %v932 = vmul.f32 %v898, 0.2
        %v933 = vmul.f32 %v903, 0.2
        %v934 = vmul.f32 %v908, 0.2
        %v935 = vmul.f32 %v913, 0.2
        %v936 = vmul.f32 %v918, 0.2
        %v937 = vmul.f32 %v923, 0.2
        %v938 = vmul.f32 %v928, 0.2
        %v939 = vmax.f32 %v893, %v931
        %v940 = vmax.f32 %v898, %v932
        %v941 = vmax.f32 %v903, %v933
        %v942 = vmax.f32 %v908, %v934
        %v943 = vmax.f32 %v913, %v935
        %v944 = vmax.f32 %v918, %v936
        %v945 = vmax.f32 %v923, %v937
        %v946 = vmax.f32 %v928, %v938
        %v947 = vld [vmem:[%s7] sm:$0x1]
        %v948 = vld [vmem:[#allocation2] sm:$0x1]
        %950 = vset.pattern.permute.xlu0 0
        %951 = vperm.xlu0 %950, %v948
        %v952 = vpop.permute.xlu0 %951
        %v954 = vlaneseq
        %v955 = vshrl.u32 %v954, 7
        %v956 = vsub.s32 0, %v955
        %v957 = vrot.slane %v952, %v956
        %v959 = vsel %vm801, %v947, 0
        %961 = vmatprep.subr.mxu0 0.0
        %962 = vmatpush1.msra.mxu0 %v939
        %963 = vmatprep.subr.mxu0 0.0
        %964 = vmatpush1.msra.mxu0 %v940
        %965 = vmatprep.subr.mxu0 0.0
        %966 = vmatpush1.msra.mxu0 %v941
        %967 = vmatprep.subr.mxu0 0.0
        %968 = vmatpush1.msra.mxu0 %v942
        %969 = vmatprep.subr.mxu0 0.0
        %970 = vmatpush1.msra.mxu0 %v943
        %971 = vmatprep.subr.mxu0 0.0
        %972 = vmatpush1.msra.mxu0 %v944
        %973 = vmatprep.subr.mxu0 0.0
        %974 = vmatpush1.msra.mxu0 %v945
        %975 = vmatprep.subr.mxu0 0.0
        %976 = vmatpush1.msra.mxu0 %v946
        %977 = vmatprep.subr.mxu0 0.0
        %978 = vmatpush1.msra.mxu0 0.0
        %979 = vmatprep.subr.mxu0 0.0
        %980 = vmatpush1.msra.mxu0 0.0
        %981 = vmatprep.subr.mxu0 0.0
        %982 = vmatpush1.msra.mxu0 0.0
        %983 = vmatprep.subr.mxu0 0.0
        %984 = vmatpush1.msra.mxu0 0.0
        %985 = vmatprep.subr.mxu0 0.0
        %986 = vmatpush1.msra.mxu0 0.0
        %987 = vmatprep.subr.mxu0 0.0
        %988 = vmatpush1.msra.mxu0 0.0
        %989 = vmatprep.subr.mxu0 0.0
        %990 = vmatpush1.msra.mxu0 0.0
        %991 = vmatprep.subr.mxu0 0.0
        %992 = vmatpush1.msra.mxu0 0.0
        %993 = vmatprep.subr.mxu0 0.0
        %994 = vmatpush1.msra.mxu0 0.0
        %995 = vmatprep.subr.mxu0 0.0
        %996 = vmatpush1.msra.mxu0 0.0
        %997 = vmatprep.subr.mxu0 0.0
        %998 = vmatpush1.msra.mxu0 0.0
        %999 = vmatprep.subr.mxu0 0.0
        %1000 = vmatpush1.msra.mxu0 0.0
        %1001 = vmatprep.subr.mxu0 0.0
        %1002 = vmatpush1.msra.mxu0 0.0
        %1003 = vmatprep.subr.mxu0 0.0
        %1004 = vmatpush1.msra.mxu0 0.0
        %1005 = vmatprep.subr.mxu0 0.0
        %1006 = vmatpush1.msra.mxu0 0.0
        %1007 = vmatprep.subr.mxu0 0.0
        %1008 = vmatpush1.msra.mxu0 0.0
        %1009 = vmatprep.subr.mxu0 0.0
        %1010 = vmatpush1.msra.mxu0 0.0
        %1011 = vmatprep.subr.mxu0 0.0
        %1012 = vmatpush1.msra.mxu0 0.0
        %1013 = vmatprep.subr.mxu0 0.0
        %1014 = vmatpush1.msra.mxu0 0.0
        %1015 = vmatprep.subr.mxu0 0.0
        %1016 = vmatpush1.msra.mxu0 0.0
        %1017 = vmatprep.subr.mxu0 0.0
        %1018 = vmatpush1.msra.mxu0 0.0
        %1019 = vmatprep.subr.mxu0 0.0
        %1020 = vmatpush1.msra.mxu0 0.0
        %1021 = vmatprep.subr.mxu0 0.0
        %1022 = vmatpush1.msra.mxu0 0.0
        %1023 = vmatprep.subr.mxu0 0.0
        %1024 = vmatpush1.msra.mxu0 0.0
        %1025 = vmatprep.mubr.f32.mxu0 0.0
        %1026 = vmatmul.mubr.f32.gmra.mrb[0].mxu0 %v959
        %v1027 = vpop.f32.mrb[0].mxu0
        %v1028 = vadd.f32 %v957, %v1027
        %v1029 = vpop.f32.mrb[0].mxu0
        %1030 = vdwg.mxu0
        %v1031 = vxor.u32 %v1028, 2147483648
        %v1032 = vmul.f32 %v1031, 1.442695
        %v1033 = vpow.pop %v1032
        %v1034 = vadd.f32 %v1033, 1.0
        %v1035 = vrcp.pop %v1034
        %v1036 = vmul.f32 1.0, %v1035
        %1037 = vst [vmem:[%s381] sm:$0x1] %v1036
        %s1038 = sand.u32 %s232, 1
        %s1039 = scalar_lea.sflag [#allocation5], %s1038
        %s1040 = sand.u32 %s232, 1
        %s1041 = scalar_lea.vmem [#allocation4], %s1040
        // Predicated region
        $region91: #{discriminator_forward_fm.1} parent=85 // pred_check
          %p1042 = pneg %p242
        $region92: #{discriminator_forward_fm.1} parent=85 // pred_check_branch
          %1044 = sbr.rel (%p1042) target = $region94
        $region93: #{discriminator_forward_fm.1} parent=85 // pred_region
          %s1046 = ssub.s32 16, 16
          %1047 = vsyncadd %s1039, %s1046
          %s1048 = smul.addr %s25, 16
          %s1049 = scalar_lea.hbm %s9, %s1048
          %s1051 = sshll.u32 %s1041, 4
          %s1052 = int_to_ptr.vmem [resolvable:$true] %s1051
          %1054 = dma.vmem_to_hbm [thread:$0]  %s1052, 16, %s1049, %s1039
        $region94: #{discriminator_forward_fm.1} parent=85 // pred_fallthru
          _
      $region86: #{discriminator_forward_fm.1} parent=5 // pred_fallthru
        _
      %p1055 = scmp.le.s32.totalorder 2, %s20
      // Predicated region
      $region95: #{discriminator_forward_fm.1} parent=5 // pred_check
        %p1056 = pneg %p1055
      $region96: #{discriminator_forward_fm.1} parent=5 // pred_check_branch
        %1058 = sbr.rel (%p1056) target = $region98
      $region97: #{discriminator_forward_fm.1} parent=5 // pred_region
        %s1059 = ssub.s32 %s20, 2
        // Predicated region
        $region99: #{discriminator_forward_fm.1} parent=97 // pred_check
          %p1060 = pneg %p248
        $region100: #{discriminator_forward_fm.1} parent=97 // pred_check_branch
          %1062 = sbr.rel (%p1060) target = $region102
        $region101: #{discriminator_forward_fm.1} parent=97 // pred_region
          %s1063 = sand.u32 %s233, 1
          %s1064 = scalar_lea.sflag [#allocation5], %s1063
          %s1065 = sand.u32 %s233, 1
          %s1066 = scalar_lea.vmem [#allocation4], %s1065
          %1067 = dma.done %s1064, 16
        $region102: #{discriminator_forward_fm.1} parent=97 // pred_fallthru
          _
      $region98: #{discriminator_forward_fm.1} parent=5 // pred_fallthru
        _
    $region6: #{discriminator_forward_fm.1} parent=1 // loop_footer
      %s24 = sadd.s32 1, %s20
    $region7: #{discriminator_forward_fm.1} parent=1 // loop_footer_branch
      %19 = sbr.rel target = $region3
    $region8: #{discriminator_forward_fm.1} parent=1 // loop_exit
      _
    %1068 = vsyncpa [#allocation5], 1
    %s1069 = scalar_lea.sflag [#allocation5], 1
    %1070 = vsyncpa %s1069, 1

</llo_original>
